<compile_context>
chip_gen: v7x
topology: tpu7x:2x2x1
jax: 0.10.0
libtpu: 0.0.40
codegen_flags: <defaults>
</compile_context>

<pallas_src>
import math

import jax
import jax.numpy as jnp
from jax.experimental import pallas as pl
from jax.experimental.pallas import tpu as pltpu

PAD_ROWS = 32                       # each field table zero-padded to 32 rows
N_FIELDS = 4                        # hour, weekday, day, month (freq='h')
K_TOTAL = N_FIELDS * PAD_ROWS       # 128 -> one fused MXU contraction
MAX_TILE = 8192                     # max output lanes per grid step (sweepable)
SUB_CHUNK = 512                     # lanes per in-kernel sub-chunk
OUT_BLOCK_BUDGET = 4 * 1024 * 1024  # f32 bytes per output block (x2 buffers)


def _fixed_embedding_table(c_in: int, d_model: int) -> jnp.ndarray:
    """Replicates FixedEmbedding's sinusoidal table (non-learnable)."""
    assert d_model % 2 == 0, "FixedEmbedding sin/cos interleave assumes even d_model"
    pos = jnp.arange(c_in, dtype=jnp.float32)[:, None]
    div = jnp.exp(
        jnp.arange(0, d_model, 2, dtype=jnp.float32) * -(math.log(10000.0) / d_model))
    w = jnp.zeros((c_in, d_model), dtype=jnp.float32)
    w = w.at[:, 0::2].set(jnp.sin(pos * div))
    w = w.at[:, 1::2].set(jnp.cos(pos * div))
    return w


def build_tables(d_model: int):
    """Combined transposed table split into bf16 hi/lo parts, each (d_model, 128).

    K-rows 0-31: hour, 32-63: weekday, 64-95: day, 96-127: month
    (each field zero-padded to 32 rows)."""
    sizes = (24, 7, 32, 13)
    tabs = [jnp.pad(_fixed_embedding_table(c, d_model), ((0, PAD_ROWS - c), (0, 0)))
            for c in sizes]
    combined_t = jnp.concatenate(tabs, axis=0).T                  # (d_model, 128) f32
    hi = combined_t.astype(jnp.bfloat16)
    lo = (combined_t - hi.astype(jnp.float32)).astype(jnp.bfloat16)
    return hi, lo


def _embed_kernel(idx_ref, tab_hi_ref, tab_lo_ref, out_ref):
    # idx_ref:   (1, 1, TILE) int32 packed marks (hour | wd<<8 | day<<16 | mon<<24)
    # tab_*_ref: (D, 128)     bf16 hi/lo parts of the combined transposed table
    # out_ref:   (1, D, TILE) f32, D-major -> lane-dense unmasked stores
    tile = idx_ref.shape[-1]
    chunk = math.gcd(tile, SUB_CHUNK)
    n_sub = tile // chunk

    tab_hi = tab_hi_ref[...]
    tab_lo = tab_lo_ref[...]

    # Loop-invariant one-hot helpers, built ONCE per grid step (JAX does not CSE
    # broadcast_in_dim).  Row k (field f = k // 32, in-field index m = k % 32)
    # matches a packed mark iff (mark & (0x7F << 8f)) == (m << 8f).
    # All field values are < 128, so a 0x7F mask is equivalent to 0xFF and keeps
    # every constant positive (no int32 wraparound, no variable shifts).
    kio = jax.lax.broadcasted_iota(jnp.int32, (K_TOTAL, chunk), 0)
    field = kio >> 5                                   # 0..3
    m = kio & 31                                       # in-field row index
    scale = jnp.where(field == 0, 1,
            jnp.where(field == 1, 1 << 8,
            jnp.where(field == 2, 1 << 16, 1 << 24))).astype(jnp.int32)
    row_val = m * scale                                # m << (8*field)
    row_mask = jnp.int32(0x7F) * scale                 # 0x7F << (8*field)

    @pl.loop(0, n_sub)
    def _(i):
        c0 = pl.multiple_of(i * chunk, 128)
        idx = idx_ref[0, :, pl.ds(c0, chunk)]                          # (1, chunk)
        onehot = ((idx & row_mask) == row_val).astype(jnp.bfloat16)    # (128, chunk)
        acc = jnp.dot(tab_hi, onehot, preferred_element_type=jnp.float32)
        acc = acc + jnp.dot(tab_lo, onehot, preferred_element_type=jnp.float32)
        out_ref[0, :, pl.ds(c0, chunk)] = acc                          # (D, chunk)


def _choose_tile(hw: int, d: int, b: int):
    """Output lanes per grid step; prefers hw_pad == hw so no wrapper slice."""
    cap = (OUT_BLOCK_BUDGET // (d * 4)) // 128 * 128   # keep 2x output block in VMEM
    cap = max(128, min(MAX_TILE, cap))
    if hw % 128 == 0:
        min_steps = pl.cdiv(4, b)                      # feed both v7x TCs
        best = None
        for t in range(min(cap, hw), 127, -128):       # multiples of 128, descending
            if hw % t == 0:
                if best is None:
                    best = t
                if hw // t >= min_steps:
                    return t, hw
        return best, hw
    tile = max(128, min(cap, pl.cdiv(hw, 128) * 128))
    return tile, pl.cdiv(hw, tile) * tile


@jax.jit
def tmae_temporal_embedding(x, tab_hi, tab_lo):
    """x: (B, 4, H, W) integer marks (ch 0=month, 1=day, 2=weekday, 3=hour).
    Returns (B, d_model, H, W) float32 -- same semantics as the PyTorch forward."""
    x = x.astype(jnp.int32)                            # x.long()
    B, _, H, W = x.shape
    D = tab_hi.shape[0]
    HW = H * W

    tile, hw_pad = _choose_tile(HW, D, B)
    chunk = math.gcd(tile, SUB_CHUNK)

    # Pack the 4 fields into one int32 per pixel (every field value < 128).
    hour, weekday, day, month = x[:, 3], x[:, 2], x[:, 1], x[:, 0]
    packed = (hour + (weekday << 8) + (day << 16) + (month << 24)).reshape(B, 1, HW)
    if hw_pad != HW:
        packed = jnp.pad(packed, ((0, 0), (0, 0), (0, hw_pad - HW)))

    cost = pl.CostEstimate(
        flops=2 * 2 * B * hw_pad * K_TOTAL * D,
        transcendentals=0,
        bytes_accessed=B * hw_pad * 4 + B * hw_pad * D * 4 + 2 * D * K_TOTAL * 2,
    )
    vmem_bytes = (2 * tile * 4                 # idx blocks (double-buffered)
                  + 2 * D * tile * 4           # output blocks (double-buffered)
                  + 2 * 2 * D * K_TOTAL * 2    # bf16 hi/lo tables (double-buffered)
                  + K_TOTAL * chunk * 16       # one-hot + hoisted int helpers
                  + (2 << 20))                 # headroom
    vmem_limit = int(min(max(vmem_bytes, 16 << 20), 32 << 20))

    out = pl.pallas_call(
        _embed_kernel,
        out_shape=jax.ShapeDtypeStruct((B, D, hw_pad), jnp.float32),
        grid_spec=pltpu.PrefetchScalarGridSpec(
            num_scalar_prefetch=0,
            grid=(B, hw_pad // tile),
            in_specs=[
                pl.BlockSpec((1, 1, tile), lambda b, i: (b, 0, i)),
                pl.BlockSpec((D, K_TOTAL), lambda b, i: (0, 0)),
                pl.BlockSpec((D, K_TOTAL), lambda b, i: (0, 0)),
            ],
            out_specs=pl.BlockSpec((1, D, tile), lambda b, i: (b, 0, i)),
        ),
        compiler_params=pltpu.CompilerParams(
            dimension_semantics=("parallel", "parallel"),
            vmem_limit_bytes=vmem_limit),
        cost_estimate=cost,
    )(packed, tab_hi, tab_lo)

    if hw_pad != HW:                           # only when HW is genuinely ragged
        out = out[:, :, :HW]
    # D-major output: pure reshape, no transpose / extra HBM pass.
    return out.reshape(B, D, H, W)


def _reference(x, d_model):
    """Pure-JAX reference mirroring the PyTorch forward (f32 tables)."""
    x = x.astype(jnp.int32)
    hour_t = _fixed_embedding_table(24, d_model)
    wd_t = _fixed_embedding_table(7, d_model)
    day_t = _fixed_embedding_table(32, d_model)
    mon_t = _fixed_embedding_table(13, d_model)
    s = hour_t[x[:, 3]] + wd_t[x[:, 2]] + day_t[x[:, 1]] + mon_t[x[:, 0]]  # (B,H,W,D)
    return jnp.transpose(s, (0, 3, 1, 2))                                   # (B,D,H,W)


if __name__ == "__main__":
    d_model = 32
    B, H, W = 2, 16, 16

    key = jax.random.PRNGKey(0)
    k_m, k_d, k_wd, k_h = jax.random.split(key, 4)
    # channel order matches PyTorch: 0=month, 1=day, 2=weekday, 3=hour
    month = jax.random.randint(k_m, (B, 1, H, W), 0, 13)
    day = jax.random.randint(k_d, (B, 1, H, W), 0, 32)
    weekday = jax.random.randint(k_wd, (B, 1, H, W), 0, 7)
    hour = jax.random.randint(k_h, (B, 1, H, W), 0, 24)
    x = jnp.concatenate([month, day, weekday, hour], axis=1).astype(jnp.int32)

    tab_hi, tab_lo = build_tables(d_model)

    out = jax.block_until_ready(tmae_temporal_embedding(x, tab_hi, tab_lo))
    ref = _reference(x, d_model)

    assert out.shape == (B, d_model, H, W), out.shape
    # hi+lo bf16 table split bounds per-element error at ~4 * 2^-16 ≈ 6e-5 vs f32.
    max_err = float(jnp.max(jnp.abs(out - ref)))
    assert jnp.allclose(out, ref, atol=1e-4, rtol=1e-4), f"mismatch, max_err={max_err}"
    print("KERNEL_OK")
</pallas_src>

<mosaic_0001>
module attributes {stable_mosaic.version = 11 : i64} {
  func.func @_embed_kernel(%arg0: i32, %arg1: i32, %arg2: memref<1x1x128xi32, #tpu.memory_space<vmem>>, %arg3: memref<32x128xbf16, #tpu.memory_space<vmem>>, %arg4: memref<32x128xbf16, #tpu.memory_space<vmem>>, %arg5: memref<1x32x128xf32, #tpu.memory_space<vmem>>) attributes {dimension_semantics = [#tpu.dimension_semantics<parallel>, #tpu.dimension_semantics<parallel>], iteration_bounds = array<i64: 2, 2>, scalar_prefetch = 0 : i64, scratch_operands = 0 : i64, tpu.core_type = #tpu.core_type<tc>, window_params = [{transform_indices = @transform_0, window_bounds = array<i64: 1, 1, 128>}, {pipeline_mode = #tpu.pipeline_mode<synchronous>, transform_indices = @transform_1, window_bounds = array<i64: 32, 128>}, {pipeline_mode = #tpu.pipeline_mode<synchronous>, transform_indices = @transform_2, window_bounds = array<i64: 32, 128>}, {transform_indices = @transform_3, window_bounds = array<i64: 1, 32, 128>}]} {
    %c0 = arith.constant 0 : index
    %c0_0 = arith.constant 0 : index
    %0 = vector.load %arg3[%c0, %c0_0] : memref<32x128xbf16, #tpu.memory_space<vmem>>, vector<32x128xbf16>
    %c0_1 = arith.constant 0 : index
    %c0_2 = arith.constant 0 : index
    %1 = vector.load %arg4[%c0_1, %c0_2] : memref<32x128xbf16, #tpu.memory_space<vmem>>, vector<32x128xbf16>
    %2 = tpu.iota {dimensions = array<i32: 0>} : vector<128x128xi32>
    %c5_i32 = arith.constant 5 : i32
    %3 = vector.broadcast %c5_i32 : i32 to vector<128x128xi32>
    %4 = arith.shrsi %2, %3 : vector<128x128xi32>
    %c31_i32 = arith.constant 31 : i32
    %5 = vector.broadcast %c31_i32 : i32 to vector<128x128xi32>
    %6 = arith.andi %2, %5 : vector<128x128xi32>
    %c0_i32 = arith.constant 0 : i32
    %7 = vector.broadcast %c0_i32 : i32 to vector<128x128xi32>
    %8 = arith.cmpi eq, %4, %7 : vector<128x128xi32>
    %c1_i32 = arith.constant 1 : i32
    %9 = vector.broadcast %c1_i32 : i32 to vector<128x128xi32>
    %10 = arith.cmpi eq, %4, %9 : vector<128x128xi32>
    %c2_i32 = arith.constant 2 : i32
    %11 = vector.broadcast %c2_i32 : i32 to vector<128x128xi32>
    %12 = arith.cmpi eq, %4, %11 : vector<128x128xi32>
    %c65536_i32 = arith.constant 65536 : i32
    %c16777216_i32 = arith.constant 16777216 : i32
    %13 = vector.broadcast %c65536_i32 : i32 to vector<128x128xi32>
    %14 = vector.broadcast %c16777216_i32 : i32 to vector<128x128xi32>
    %15 = arith.select %12, %13, %14 : vector<128x128xi1>, vector<128x128xi32>
    %c256_i32 = arith.constant 256 : i32
    %16 = vector.broadcast %c256_i32 : i32 to vector<128x128xi32>
    %17 = arith.select %10, %16, %15 : vector<128x128xi1>, vector<128x128xi32>
    %c1_i32_3 = arith.constant 1 : i32
    %18 = vector.broadcast %c1_i32_3 : i32 to vector<128x128xi32>
    %19 = arith.select %8, %18, %17 : vector<128x128xi1>, vector<128x128xi32>
    %20 = arith.muli %6, %19 : vector<128x128xi32>
    %c127_i32 = arith.constant 127 : i32
    %21 = vector.broadcast %c127_i32 : i32 to vector<128x128xi32>
    %22 = arith.muli %21, %19 : vector<128x128xi32>
    %c0_i32_4 = arith.constant 0 : i32
    %c1_i32_5 = arith.constant 1 : i32
    %23 = arith.muli %c0_i32_4, %c1_i32_5 : i32
    %c0_i32_6 = arith.constant 0 : i32
    %24 = arith.addi %c0_i32_6, %23 : i32
    %c128_i32 = arith.constant 128 : i32
    %25 = arith.muli %24, %c128_i32 : i32
    %26 = tpu.assume_multiple %25, 128 : i32
    %c0_7 = arith.constant 0 : index
    %c0_8 = arith.constant 0 : index
    %27 = arith.index_cast %26 : i32 to index
    %28 = vector.load %arg2[%c0_7, %c0_8, %27] : memref<1x1x128xi32, #tpu.memory_space<vmem>>, vector<1x1x128xi32>
    %29 = vector.shape_cast %28 : vector<1x1x128xi32> to vector<1x128xi32>
    %30 = vector.broadcast %29 : vector<1x128xi32> to vector<128x128xi32>
    %31 = arith.andi %30, %22 : vector<128x128xi32>
    %32 = arith.cmpi eq, %31, %20 : vector<128x128xi32>
    %33 = arith.extui %32 : vector<128x128xi1> to vector<128x128xi32>
    %34 = arith.sitofp %33 : vector<128x128xi32> to vector<128x128xf32>
    %35 = arith.truncf %34 : vector<128x128xf32> to vector<128x128xbf16>
    %cst = arith.constant dense<0.000000e+00> : vector<32x128xf32>
    %36 = tpu.matmul %0, %35, %cst {dimension_numbers = #tpu.dot_dimension_numbers<[1], [0], [0], [1], [0, 0, 1, 1], [], []>} : vector<32x128xbf16>, vector<128x128xbf16>, vector<32x128xf32> -> vector<32x128xf32>
    %cst_9 = arith.constant dense<0.000000e+00> : vector<32x128xf32>
    %37 = tpu.matmul %1, %35, %cst_9 {dimension_numbers = #tpu.dot_dimension_numbers<[1], [0], [0], [1], [0, 0, 1, 1], [], []>} : vector<32x128xbf16>, vector<128x128xbf16>, vector<32x128xf32> -> vector<32x128xf32>
    %38 = arith.addf %36, %37 : vector<32x128xf32>
    %c0_10 = arith.constant 0 : index
    %c0_11 = arith.constant 0 : index
    %39 = arith.index_cast %26 : i32 to index
    %40 = vector.load %arg5[%c0_10, %c0_11, %39] : memref<1x32x128xf32, #tpu.memory_space<vmem>>, vector<1x32x128xf32>
    %41 = vector.shape_cast %40 : vector<1x32x128xf32> to vector<32x128xf32>
    %42 = vector.shape_cast %38 : vector<32x128xf32> to vector<1x32x128xf32>
    tpu.vector_store %arg5[%c0_10, %c0_11, %39], %42 {strides = array<i32>} : memref<1x32x128xf32, #tpu.memory_space<vmem>>, vector<1x32x128xf32>,
    %c1_i32_12 = arith.constant 1 : i32
    return
  }
  func.func @transform_0(%arg0: i32, %arg1: i32) -> (i32, i32, i32) {
    %c0_i32 = arith.constant 0 : i32
    %c0_i32_0 = arith.constant 0 : i32
    return %arg0, %c0_i32, %arg1 : i32, i32, i32
  }
  func.func @transform_1(%arg0: i32, %arg1: i32) -> (i32, i32) {
    %c0_i32 = arith.constant 0 : i32
    %c0_i32_0 = arith.constant 0 : i32
    %c0_i32_1 = arith.constant 0 : i32
    return %c0_i32, %c0_i32_0 : i32, i32
  }
  func.func @transform_2(%arg0: i32, %arg1: i32) -> (i32, i32) {
    %c0_i32 = arith.constant 0 : i32
    %c0_i32_0 = arith.constant 0 : i32
    %c0_i32_1 = arith.constant 0 : i32
    return %c0_i32, %c0_i32_0 : i32, i32
  }
  func.func @transform_3(%arg0: i32, %arg1: i32) -> (i32, i32, i32) {
    %c0_i32 = arith.constant 0 : i32
    %c0_i32_0 = arith.constant 0 : i32
    return %arg0, %c0_i32, %arg1 : i32, i32, i32
  }
}

</mosaic_0001>

<llo_original>
// kernel: tmae_temporal_embedding.1
$region0: #{tmae_temporal_embedding.1}
  #allocation0 [shape = 'u32[]', space=smem, size = 0x4, offset = 0x4, fixed_abs, tag = 'smem constant byte address 0x4 - core index']
  #allocation1 [shape = 'u32[144,128]{1,0:T(1,128)}', space=vmem, size = 0x12000, scoped, tag = 'internal scratch']
  %s0 = inlined_call_operand.vmem [shape: s32[2,1,256], index: 0, kind: input, shape index: {}]
  %s1 = inlined_call_operand.vmem [shape: bf16[32,128], index: 1, kind: input, shape index: {}]
  %s2 = inlined_call_operand.vmem [shape: bf16[32,128], index: 2, kind: input, shape index: {}]
  %s3 = inlined_call_operand.vmem [shape: f32[2,32,256], index: 3, kind: output, shape index: {}]
  %s4 = sld [smem:[#allocation0]]
  $region79: #{tmae_temporal_embedding.1} parent=0
    _
  %s6 = ssub.s32 1, %s4
  %s7 = scalar_select 0, %s6, %s4
  $region1: #{tmae_temporal_embedding.1} parent=0
    #allocation2 [shape = 'u8[32768]{0}', space=vmem, size = 0x8000, scoped, tag = 'output window, operand 0']
    loop: start=0, step=1, limit=6
    $region2: #{tmae_temporal_embedding.1} parent=1 // loop_pre_header
      _
    $region3: #{tmae_temporal_embedding.1} parent=1 // loop_header
      %s9 = sphi 0, %s13
      %p10 = scmp.ge.s32.totalorder %s9, 6
      %s16 = sphi 0, %s28
      %s17 = sphi 0, %s24
      %s18 = sphi 0, %s16
      %s19 = sphi 0, %s17
      %s20 = sphi 0, %s18
      %s21 = sphi 0, %s19
      %s33 = sphi 0, %s35
      %s36 = sphi 0, %s33
      %s37 = sphi 0, %s36
      %s53 = sphi 0, %s37
      %s57 = sphi 0, %s57
      %s59 = sphi 0, %s57
      %s60 = sphi 0, %s59
      %s74 = sphi 0, %s60
      %s78 = sphi 0, %s78
      %s80 = sphi 0, %s78
      %s81 = sphi 0, %s80
      %s95 = sphi 0, %s81
      %s103 = sphi 0, %s105
      %s106 = sphi 0, %s103
      %s107 = sphi 0, %s106
      %s123 = sphi 0, %s107
    $region4: #{tmae_temporal_embedding.1} parent=1 // loop_header_branch
      %12 = sbr.rel (%p10) target = $region8
    $region5: #{tmae_temporal_embedding.1} parent=1 // loop_body
      %s14 = ssub.s32 %s9, 1
      %s15 = ssub.s32 %s9, 2
      %s22 = sadd.s32 1, %s17
      %p23 = scmp.ge.s32.totalorder %s22, 2
      %s24 = scalar_select %p23, 0, %s22
      %s25 = sadd.s32 1, %s16
      %s26 = scalar_select %p23, %s25, %s16
      %p27 = scmp.ge.s32.totalorder %s26, 2
      %s28 = scalar_select %p27, 0, %s26
      %s29 = ssub.s32 %s16, %s28
      %s30 = ssub.s32 %s17, %s24
      %s31 = sor.u32 %s29, %s30
      %p32 = scmp.eq.s32.totalorder %s31, 0
      %s34 = sadd.s32 %s33, 1
      %s35 = scalar_select %p32, %s33, %s34
      %p38 = pneg %p32
      %p39 = scmp.eq.s32.totalorder %s9, 3
      %p40 = por %p38, %p39
      %p41 = scmp.ne.s32.totalorder %s33, %s36
      %p42 = scmp.eq.s32.totalorder %s9, 0
      %p43 = por %p41, %p42
      %p44 = scmp.ne.s32.totalorder %s33, %s36
      %p45 = scmp.eq.s32.totalorder %s14, 3
      %p46 = por %p44, %p45
      %p47 = scmp.ne.s32.totalorder %s36, %s37
      %p48 = scmp.eq.s32.totalorder %s14, 0
      %p49 = por %p47, %p48
      %p50 = scmp.ne.s32.totalorder %s36, %s37
      %p51 = scmp.eq.s32.totalorder %s15, 3
      %p52 = por %p50, %p51
      %p54 = scmp.ne.s32.totalorder %s37, %s53
      %p55 = scmp.eq.s32.totalorder %s15, 0
      %p56 = por %p54, %p55
      %s58 = sadd.s32 %s57, 1
      %p61 = scmp.eq.s32.totalorder %s9, 3
      %p62 = scmp.ne.s32.totalorder %s57, %s59
      %p63 = scmp.eq.s32.totalorder %s9, 0
      %p64 = por %p62, %p63
      %p65 = scmp.ne.s32.totalorder %s57, %s59
      %p66 = scmp.eq.s32.totalorder %s14, 3
      %p67 = por %p65, %p66
      %p68 = scmp.ne.s32.totalorder %s59, %s60
      %p69 = scmp.eq.s32.totalorder %s14, 0
      %p70 = por %p68, %p69
      %p71 = scmp.ne.s32.totalorder %s59, %s60
      %p72 = scmp.eq.s32.totalorder %s15, 3
      %p73 = por %p71, %p72
      %p75 = scmp.ne.s32.totalorder %s60, %s74
      %p76 = scmp.eq.s32.totalorder %s15, 0
      %p77 = por %p75, %p76
      %s79 = sadd.s32 %s78, 1
      %p82 = scmp.eq.s32.totalorder %s9, 3
      %p83 = scmp.ne.s32.totalorder %s78, %s80
      %p84 = scmp.eq.s32.totalorder %s9, 0
      %p85 = por %p83, %p84
      %p86 = scmp.ne.s32.totalorder %s78, %s80
      %p87 = scmp.eq.s32.totalorder %s14, 3
      %p88 = por %p86, %p87
      %p89 = scmp.ne.s32.totalorder %s80, %s81
      %p90 = scmp.eq.s32.totalorder %s14, 0
      %p91 = por %p89, %p90
      %p92 = scmp.ne.s32.totalorder %s80, %s81
      %p93 = scmp.eq.s32.totalorder %s15, 3
      %p94 = por %p92, %p93
      %p96 = scmp.ne.s32.totalorder %s81, %s95
      %p97 = scmp.eq.s32.totalorder %s15, 0
      %p98 = por %p96, %p97
      %s99 = ssub.s32 %s16, %s28
      %s100 = ssub.s32 %s17, %s24
      %s101 = sor.u32 %s99, %s100
      %p102 = scmp.eq.s32.totalorder %s101, 0
      %s104 = sadd.s32 %s103, 1
      %s105 = scalar_select %p102, %s103, %s104
      %p108 = pneg %p102
      %p109 = scmp.eq.s32.totalorder %s9, 3
      %p110 = por %p108, %p109
      %p111 = scmp.ne.s32.totalorder %s103, %s106
      %p112 = scmp.eq.s32.totalorder %s9, 0
      %p113 = por %p111, %p112
      %p114 = scmp.ne.s32.totalorder %s103, %s106
      %p115 = scmp.eq.s32.totalorder %s14, 3
      %p116 = por %p114, %p115
      %p117 = scmp.ne.s32.totalorder %s106, %s107
      %p118 = scmp.eq.s32.totalorder %s14, 0
      %p119 = por %p117, %p118
      %p120 = scmp.ne.s32.totalorder %s106, %s107
      %p121 = scmp.eq.s32.totalorder %s15, 3
      %p122 = por %p120, %p121
      %p124 = scmp.ne.s32.totalorder %s107, %s123
      %p125 = scmp.eq.s32.totalorder %s15, 0
      %p126 = por %p124, %p125
      %p127 = scmp.le.s32.totalorder 1, %s9
      %p128 = scmp.lt.s32.totalorder %s9, 5
      %p129 = pnand %p127, %p128
      %p130 = pneg %p129
      // Predicated region
      $region9: #{tmae_temporal_embedding.1} parent=5 // pred_check
        _
      $region10: #{tmae_temporal_embedding.1} parent=5 // pred_check_branch
        %132 = sbr.rel (%p129) target = $region12
      $region11: #{tmae_temporal_embedding.1} parent=5 // pred_region
        %s133 = ssub.s32 %s9, 1
        // Predicated region
        $region13: #{tmae_temporal_embedding.1} parent=11 // pred_check
          %p134 = pneg %p70
        $region14: #{tmae_temporal_embedding.1} parent=11 // pred_check_branch
          %136 = sbr.rel (%p134) target = $region16
        $region15: #{tmae_temporal_embedding.1} parent=11 // pred_region
          _
        $region16: #{tmae_temporal_embedding.1} parent=11 // pred_fallthru
          _
        // Predicated region
        $region17: #{tmae_temporal_embedding.1} parent=11 // pred_check
          %p137 = pneg %p91
        $region18: #{tmae_temporal_embedding.1} parent=11 // pred_check_branch
          %139 = sbr.rel (%p137) target = $region20
        $region19: #{tmae_temporal_embedding.1} parent=11 // pred_region
          _
        $region20: #{tmae_temporal_embedding.1} parent=11 // pred_fallthru
          _
      $region12: #{tmae_temporal_embedding.1} parent=5 // pred_fallthru
        _
      %p140 = scmp.lt.s32.totalorder %s9, 4
      // Predicated region
      $region21: #{tmae_temporal_embedding.1} parent=5 // pred_check
        %p141 = pneg %p140
      $region22: #{tmae_temporal_embedding.1} parent=5 // pred_check_branch
        %143 = sbr.rel (%p141) target = $region24
      $region23: #{tmae_temporal_embedding.1} parent=5 // pred_region
        // Predicated region
        $region25: #{tmae_temporal_embedding.1} parent=23 // pred_check
          %p144 = pneg %p43
        $region26: #{tmae_temporal_embedding.1} parent=23 // pred_check_branch
          %146 = sbr.rel (%p144) target = $region28
        $region27: #{tmae_temporal_embedding.1} parent=23 // pred_region
          %p147 = scmp.lt.s32.totalorder %s16, 1
          %s148 = scalar_select %p147, %s16, 1
          %p149 = scmp.lt.s32.totalorder %s17, 1
          %s150 = scalar_select %p149, %s17, 1
          %s151 = smul.addr %s148, 2
          %s152 = sadd.s32 %s150, %s151
          %s153 = scalar_lea.vmem %s0, %s152
        $region28: #{tmae_temporal_embedding.1} parent=23 // pred_fallthru
          _
      $region24: #{tmae_temporal_embedding.1} parent=5 // pred_fallthru
        _
      %p154 = scmp.le.s32.totalorder 1, %s9
      %p155 = scmp.lt.s32.totalorder %s9, 5
      %p156 = pnand %p154, %p155
      %p157 = pneg %p156
      // Predicated region
      $region29: #{tmae_temporal_embedding.1} parent=5 // pred_check
        _
      $region30: #{tmae_temporal_embedding.1} parent=5 // pred_check_branch
        %159 = sbr.rel (%p156) target = $region32
      $region31: #{tmae_temporal_embedding.1} parent=5 // pred_region
        %s160 = ssub.s32 %s9, 1
        %p161 = scmp.lt.s32.totalorder %s18, 1
        %s162 = scalar_select %p161, %s18, 1
        %p163 = scmp.lt.s32.totalorder %s19, 1
        %s164 = scalar_select %p163, %s19, 1
        %s165 = smul.addr %s162, 2
        %s166 = sadd.s32 %s164, %s165
        %s167 = scalar_lea.vmem %s0, %s166
        %p168 = pneg %p49
        %p169 = pneg %p46
        %p170 = pneg %p70
        %p171 = pneg %p67
        %p172 = pneg %p91
        %p173 = pneg %p88
        %p174 = pneg %p119
        %p175 = pneg %p116
        %s176 = sand.u32 %s106, 1
        %s177 = sand.u32 %s106, 1
        %s178 = smul.addr %s177, 32
        %s179 = scalar_lea.vmem [#allocation2], %s178
        %p180 = scmp.lt.s32.totalorder %s18, 1
        %s181 = scalar_select %p180, %s18, 1
        %p182 = scmp.lt.s32.totalorder %s19, 1
        %s183 = scalar_select %p182, %s19, 1
        %s184 = smul.addr %s181, 2
        %s185 = sadd.s32 %s183, %s184
        %s186 = scalar_lea.vmem %s0, %s185
        %v188 = vld [vmem:[%s1] sm:$0xf]
        %v189 = vld [vmem:[%s1 + $0x4] sm:$0xf]
        %v190 = vld [vmem:[%s1 + $0x8] sm:$0xf]
        %v191 = vld [vmem:[%s1 + $0xc] sm:$0xf]
        %v192 = vld [vmem:[%s2] sm:$0xf]
        %v193 = vld [vmem:[%s2 + $0x4] sm:$0xf]
        %v194 = vld [vmem:[%s2 + $0x8] sm:$0xf]
        %v195 = vld [vmem:[%s2 + $0xc] sm:$0xf]
        %v196 = vlaneseq
        %v197 = vshrl.u32 %v196, 7
        %v198 = vadd.s32 %v197, 8
        %v199 = vadd.s32 %v197, 16
        %v200 = vadd.s32 %v197, 24
        %v201 = vadd.s32 %v197, 32
        %v202 = vadd.s32 %v197, 40
        %v203 = vadd.s32 %v197, 48
        %v204 = vadd.s32 %v197, 56
        %v205 = vadd.s32 %v197, 64
        %v206 = vadd.s32 %v197, 72
        %v207 = vadd.s32 %v197, 80
        %v208 = vadd.s32 %v197, 88
        %v209 = vadd.s32 %v197, 96
        %v210 = vadd.s32 %v197, 104
        %v211 = vadd.s32 %v197, 112
        %v212 = vadd.s32 %v197, 120
        %v213 = vshra.s32 %v197, 5
        %v214 = vshra.s32 %v198, 5
        %v215 = vshra.s32 %v199, 5
        %v216 = vshra.s32 %v200, 5
        %v217 = vshra.s32 %v201, 5
        %v218 = vshra.s32 %v202, 5
        %v219 = vshra.s32 %v203, 5
        %v220 = vshra.s32 %v204, 5
        %v221 = vshra.s32 %v205, 5
        %v222 = vshra.s32 %v206, 5
        %v223 = vshra.s32 %v207, 5
        %v224 = vshra.s32 %v208, 5
        %v225 = vshra.s32 %v209, 5
        %v226 = vshra.s32 %v210, 5
        %v227 = vshra.s32 %v211, 5
        %v228 = vshra.s32 %v212, 5
        %v229 = vand.u32 %v197, 31
        %v230 = vand.u32 %v198, 31
        %v231 = vand.u32 %v199, 31
        %v232 = vand.u32 %v200, 31
        %v233 = vand.u32 %v201, 31
        %v234 = vand.u32 %v202, 31
        %v235 = vand.u32 %v203, 31
        %v236 = vand.u32 %v204, 31
        %v237 = vand.u32 %v205, 31
        %v238 = vand.u32 %v206, 31
        %v239 = vand.u32 %v207, 31
        %v240 = vand.u32 %v208, 31
        %v241 = vand.u32 %v209, 31
        %v242 = vand.u32 %v210, 31
        %v243 = vand.u32 %v211, 31
        %v244 = vand.u32 %v212, 31
        %vm245 = vcmp.eq.s32.totalorder %v213, 0
        %vm246 = vcmp.eq.s32.totalorder %v214, 0
        %vm247 = vcmp.eq.s32.totalorder %v215, 0
        %vm248 = vcmp.eq.s32.totalorder %v216, 0
        %vm249 = vcmp.eq.s32.totalorder %v217, 0
        %vm250 = vcmp.eq.s32.totalorder %v218, 0
        %vm251 = vcmp.eq.s32.totalorder %v219, 0
        %vm252 = vcmp.eq.s32.totalorder %v220, 0
        %vm253 = vcmp.eq.s32.totalorder %v221, 0
        %vm254 = vcmp.eq.s32.totalorder %v222, 0
        %vm255 = vcmp.eq.s32.totalorder %v223, 0
        %vm256 = vcmp.eq.s32.totalorder %v224, 0
        %vm257 = vcmp.eq.s32.totalorder %v225, 0
        %vm258 = vcmp.eq.s32.totalorder %v226, 0
        %vm259 = vcmp.eq.s32.totalorder %v227, 0
        %vm260 = vcmp.eq.s32.totalorder %v228, 0
        %vm261 = vcmp.eq.s32.totalorder %v213, 1
        %vm262 = vcmp.eq.s32.totalorder %v214, 1
        %vm263 = vcmp.eq.s32.totalorder %v215, 1
        %vm264 = vcmp.eq.s32.totalorder %v216, 1
        %vm265 = vcmp.eq.s32.totalorder %v217, 1
        %vm266 = vcmp.eq.s32.totalorder %v218, 1
        %vm267 = vcmp.eq.s32.totalorder %v219, 1
        %vm268 = vcmp.eq.s32.totalorder %v220, 1
        %vm269 = vcmp.eq.s32.totalorder %v221, 1
        %vm270 = vcmp.eq.s32.totalorder %v222, 1
        %vm271 = vcmp.eq.s32.totalorder %v223, 1
        %vm272 = vcmp.eq.s32.totalorder %v224, 1
        %vm273 = vcmp.eq.s32.totalorder %v225, 1
        %vm274 = vcmp.eq.s32.totalorder %v226, 1
        %vm275 = vcmp.eq.s32.totalorder %v227, 1
        %vm276 = vcmp.eq.s32.totalorder %v228, 1
        %vm277 = vcmp.eq.s32.totalorder %v213, 2
        %vm278 = vcmp.eq.s32.totalorder %v214, 2
        %vm279 = vcmp.eq.s32.totalorder %v215, 2
        %vm280 = vcmp.eq.s32.totalorder %v216, 2
        %vm281 = vcmp.eq.s32.totalorder %v217, 2
        %vm282 = vcmp.eq.s32.totalorder %v218, 2
        %vm283 = vcmp.eq.s32.totalorder %v219, 2
        %vm284 = vcmp.eq.s32.totalorder %v220, 2
        %vm285 = vcmp.eq.s32.totalorder %v221, 2
        %vm286 = vcmp.eq.s32.totalorder %v222, 2
        %vm287 = vcmp.eq.s32.totalorder %v223, 2
        %vm288 = vcmp.eq.s32.totalorder %v224, 2
        %vm289 = vcmp.eq.s32.totalorder %v225, 2
        %vm290 = vcmp.eq.s32.totalorder %v226, 2
        %vm291 = vcmp.eq.s32.totalorder %v227, 2
        %vm292 = vcmp.eq.s32.totalorder %v228, 2
        %v293 = vsel %vm277, 65536, 16777216
        %v294 = vsel %vm278, 65536, 16777216
        %v295 = vsel %vm279, 65536, 16777216
        %v296 = vsel %vm280, 65536, 16777216
        %v297 = vsel %vm281, 65536, 16777216
        %v298 = vsel %vm282, 65536, 16777216
        %v299 = vsel %vm283, 65536, 16777216
        %v300 = vsel %vm284, 65536, 16777216
        %v301 = vsel %vm285, 65536, 16777216
        %v302 = vsel %vm286, 65536, 16777216
        %v303 = vsel %vm287, 65536, 16777216
        %v304 = vsel %vm288, 65536, 16777216
        %v305 = vsel %vm289, 65536, 16777216
        %v306 = vsel %vm290, 65536, 16777216
        %v307 = vsel %vm291, 65536, 16777216
        %v308 = vsel %vm292, 65536, 16777216
        %v309 = vsel %vm261, 256, %v293
        %v310 = vsel %vm262, 256, %v294
        %v311 = vsel %vm263, 256, %v295
        %v312 = vsel %vm264, 256, %v296
        %v313 = vsel %vm265, 256, %v297
        %v314 = vsel %vm266, 256, %v298
        %v315 = vsel %vm267, 256, %v299
        %v316 = vsel %vm268, 256, %v300
        %v317 = vsel %vm269, 256, %v301
        %v318 = vsel %vm270, 256, %v302
        %v319 = vsel %vm271, 256, %v303
        %v320 = vsel %vm272, 256, %v304
        %v321 = vsel %vm273, 256, %v305
        %v322 = vsel %vm274, 256, %v306
        %v323 = vsel %vm275, 256, %v307
        %v324 = vsel %vm276, 256, %v308
        %v325 = vsel %vm245, 1, %v309
        %v326 = vsel %vm246, 1, %v310
        %v327 = vsel %vm247, 1, %v311
        %v328 = vsel %vm248, 1, %v312
        %v329 = vsel %vm249, 1, %v313
        %v330 = vsel %vm250, 1, %v314
        %v331 = vsel %vm251, 1, %v315
        %v332 = vsel %vm252, 1, %v316
        %v333 = vsel %vm253, 1, %v317
        %v334 = vsel %vm254, 1, %v318
        %v335 = vsel %vm255, 1, %v319
        %v336 = vsel %vm256, 1, %v320
        %v337 = vsel %vm257, 1, %v321
        %v338 = vsel %vm258, 1, %v322
        %v339 = vsel %vm259, 1, %v323
        %v340 = vsel %vm260, 1, %v324
        %v341 = vmul.u32 %v229, %v325
        %v342 = vmul.u32 %v230, %v326
        %v343 = vmul.u32 %v231, %v327
        %v344 = vmul.u32 %v232, %v328
        %v345 = vmul.u32 %v233, %v329
        %v346 = vmul.u32 %v234, %v330
        %v347 = vmul.u32 %v235, %v331
        %v348 = vmul.u32 %v236, %v332
        %v349 = vmul.u32 %v237, %v333
        %v350 = vmul.u32 %v238, %v334
        %v351 = vmul.u32 %v239, %v335
        %v352 = vmul.u32 %v240, %v336
        %v353 = vmul.u32 %v241, %v337
        %v354 = vmul.u32 %v242, %v338
        %v355 = vmul.u32 %v243, %v339
        %v356 = vmul.u32 %v244, %v340
        %v357 = vmul.u32 %v325, 127
        %v358 = vmul.u32 %v326, 127
        %v359 = vmul.u32 %v327, 127
        %v360 = vmul.u32 %v328, 127
        %v361 = vmul.u32 %v329, 127
        %v362 = vmul.u32 %v330, 127
        %v363 = vmul.u32 %v331, 127
        %v364 = vmul.u32 %v332, 127
        %v365 = vmul.u32 %v333, 127
        %v366 = vmul.u32 %v334, 127
        %v367 = vmul.u32 %v335, 127
        %v368 = vmul.u32 %v336, 127
        %v369 = vmul.u32 %v337, 127
        %v370 = vmul.u32 %v338, 127
        %v371 = vmul.u32 %v339, 127
        %v372 = vmul.u32 %v340, 127
        %v373 = vld [vmem:[%s186] sm:$0x1]
        %v374 = vlaneseq
        %v375 = vshrl.u32 %v374, 7
        %v376 = vsub.s32 0, %v375
        %v377 = vrot.slane %v373, %v376
        %v378 = vand.u32 %v377, %v357
        %v379 = vand.u32 %v377, %v358
        %v380 = vand.u32 %v377, %v359
        %v381 = vand.u32 %v377, %v360
        %v382 = vand.u32 %v377, %v361
        %v383 = vand.u32 %v377, %v362
        %v384 = vand.u32 %v377, %v363
        %v385 = vand.u32 %v377, %v364
        %v386 = vand.u32 %v377, %v365
        %v387 = vand.u32 %v377, %v366
        %v388 = vand.u32 %v377, %v367
        %v389 = vand.u32 %v377, %v368
        %v390 = vand.u32 %v377, %v369
        %v391 = vand.u32 %v377, %v370
        %v392 = vand.u32 %v377, %v371
        %v393 = vand.u32 %v377, %v372
        %vm394 = vcmp.eq.s32.totalorder %v378, %v341
        %vm395 = vcmp.eq.s32.totalorder %v379, %v342
        %vm396 = vcmp.eq.s32.totalorder %v380, %v343
        %vm397 = vcmp.eq.s32.totalorder %v381, %v344
        %vm398 = vcmp.eq.s32.totalorder %v382, %v345
        %vm399 = vcmp.eq.s32.totalorder %v383, %v346
        %vm400 = vcmp.eq.s32.totalorder %v384, %v347
        %vm401 = vcmp.eq.s32.totalorder %v385, %v348
        %vm402 = vcmp.eq.s32.totalorder %v386, %v349
        %vm403 = vcmp.eq.s32.totalorder %v387, %v350
        %vm404 = vcmp.eq.s32.totalorder %v388, %v351
        %vm405 = vcmp.eq.s32.totalorder %v389, %v352
        %vm406 = vcmp.eq.s32.totalorder %v390, %v353
        %vm407 = vcmp.eq.s32.totalorder %v391, %v354
        %vm408 = vcmp.eq.s32.totalorder %v392, %v355
        %vm409 = vcmp.eq.s32.totalorder %v393, %v356
        %v410 = vsel %vm394, 1, 0
        %v411 = vsel %vm395, 1, 0
        %v412 = vsel %vm396, 1, 0
        %v413 = vsel %vm397, 1, 0
        %v414 = vsel %vm398, 1, 0
        %v415 = vsel %vm399, 1, 0
        %v416 = vsel %vm400, 1, 0
        %v417 = vsel %vm401, 1, 0
        %v418 = vsel %vm402, 1, 0
        %v419 = vsel %vm403, 1, 0
        %v420 = vsel %vm404, 1, 0
        %v421 = vsel %vm405, 1, 0
        %v422 = vsel %vm406, 1, 0
        %v423 = vsel %vm407, 1, 0
        %v424 = vsel %vm408, 1, 0
        %v425 = vsel %vm409, 1, 0
        %v426 = vcvt.s32.f32 %v410
        %v427 = vcvt.s32.f32 %v411
        %v428 = vcvt.s32.f32 %v412
        %v429 = vcvt.s32.f32 %v413
        %v430 = vcvt.s32.f32 %v414
        %v431 = vcvt.s32.f32 %v415
        %v432 = vcvt.s32.f32 %v416
        %v433 = vcvt.s32.f32 %v417
        %v434 = vcvt.s32.f32 %v418
        %v435 = vcvt.s32.f32 %v419
        %v436 = vcvt.s32.f32 %v420
        %v437 = vcvt.s32.f32 %v421
        %v438 = vcvt.s32.f32 %v422
        %v439 = vcvt.s32.f32 %v423
        %v440 = vcvt.s32.f32 %v424
        %v441 = vcvt.s32.f32 %v425
        %v442 = vpack.c.bf16 %v427, %v426
        %v443 = vpack.c.bf16 %v429, %v428
        %v444 = vpack.c.bf16 %v431, %v430
        %v445 = vpack.c.bf16 %v433, %v432
        %v446 = vpack.c.bf16 %v435, %v434
        %v447 = vpack.c.bf16 %v437, %v436
        %v448 = vpack.c.bf16 %v439, %v438
        %v449 = vpack.c.bf16 %v441, %v440
        %v454 = vunpack.c.l.b16 %v192
        %v455 = vunpack.c.l.b16 %v193
        %v456 = vunpack.c.l.b16 %v194
        %v457 = vunpack.c.l.b16 %v195
        %v458 = vpack.c.b16 %v455, %v454
        %v459 = vpack.c.b16 %v457, %v456
        %462 = vmatprep.subr.bf16.mxu0 0
        %463 = vmatpush1.bf16.msra.mxu0 %v442
        %464 = vmatprep.subr.bf16.mxu0 0
        %465 = vmatpush1.bf16.msra.mxu0 %v443
        %466 = vmatprep.subr.bf16.mxu0 0
        %467 = vmatpush1.bf16.msra.mxu0 %v444
        %468 = vmatprep.subr.bf16.mxu0 0
        %469 = vmatpush1.bf16.msra.mxu0 %v445
        %470 = vmatprep.subr.bf16.mxu0 0
        %471 = vmatpush1.bf16.msra.mxu0 %v446
        %472 = vmatprep.subr.bf16.mxu0 0
        %473 = vmatpush1.bf16.msra.mxu0 %v447
        %474 = vmatprep.subr.bf16.mxu0 0
        %475 = vmatpush1.bf16.msra.mxu0 %v448
        %476 = vmatprep.subr.bf16.mxu0 0
        %477 = vmatpush1.bf16.msra.mxu0 %v449
        %478 = vmatprep.subr.bf16.mxu0 0
        %479 = vmatpush1.bf16.msra.mxu0 0
        %480 = vmatprep.subr.bf16.mxu0 0
        %481 = vmatpush1.bf16.msra.mxu0 0
        %482 = vmatprep.subr.bf16.mxu0 0
        %483 = vmatpush1.bf16.msra.mxu0 0
        %484 = vmatprep.subr.bf16.mxu0 0
        %485 = vmatpush1.bf16.msra.mxu0 0
        %486 = vmatprep.subr.bf16.mxu0 0
        %487 = vmatpush1.bf16.msra.mxu0 0
        %488 = vmatprep.subr.bf16.mxu0 0
        %489 = vmatpush1.bf16.msra.mxu0 0
        %490 = vmatprep.subr.bf16.mxu0 0
        %491 = vmatpush1.bf16.msra.mxu0 0
        %492 = vmatprep.subr.bf16.mxu0 0
        %493 = vmatpush1.bf16.msra.mxu0 0
        %494 = vmatprep.mubr.bf16.mxu0 0
        %495 = vmatmul.mubr.bf16.gmra.mrb[0].mxu0 %v458
        %v496 = vpop.f32.mrb[0].mxu0
        %v497 = vadd.f32 0.0, %v496
        %v498 = vpop.f32.mrb[0].mxu0
        %v499 = vpop.f32.mrb[0].mxu0
        %v500 = vadd.f32 0.0, %v499
        %v501 = vpop.f32.mrb[0].mxu0
        %502 = vmatprep.mubr.bf16.mxu0 0
        %503 = vmatmul.mubr.bf16.gmra.mrb[0].mxu0 %v459
        %v504 = vpop.f32.mrb[0].mxu0
        %v505 = vadd.f32 0.0, %v504
        %v506 = vpop.f32.mrb[0].mxu0
        %v507 = vpop.f32.mrb[0].mxu0
        %v508 = vadd.f32 0.0, %v507
        %v509 = vpop.f32.mrb[0].mxu0
        %510 = vdwg.mxu0
        %v515 = vunpack.c.l.b16 %v188
        %v516 = vunpack.c.l.b16 %v189
        %v517 = vunpack.c.l.b16 %v190
        %v518 = vunpack.c.l.b16 %v191
        %v519 = vpack.c.b16 %v516, %v515
        %v520 = vpack.c.b16 %v518, %v517
        %523 = vmatprep.subr.bf16.mxu0 0
        %524 = vmatpush1.bf16.msra.mxu0 %v442
        %525 = vmatprep.subr.bf16.mxu0 0
        %526 = vmatpush1.bf16.msra.mxu0 %v443
        %527 = vmatprep.subr.bf16.mxu0 0
        %528 = vmatpush1.bf16.msra.mxu0 %v444
        %529 = vmatprep.subr.bf16.mxu0 0
        %530 = vmatpush1.bf16.msra.mxu0 %v445
        %531 = vmatprep.subr.bf16.mxu0 0
        %532 = vmatpush1.bf16.msra.mxu0 %v446
        %533 = vmatprep.subr.bf16.mxu0 0
        %534 = vmatpush1.bf16.msra.mxu0 %v447
        %535 = vmatprep.subr.bf16.mxu0 0
        %536 = vmatpush1.bf16.msra.mxu0 %v448
        %537 = vmatprep.subr.bf16.mxu0 0
        %538 = vmatpush1.bf16.msra.mxu0 %v449
        %539 = vmatprep.subr.bf16.mxu0 0
        %540 = vmatpush1.bf16.msra.mxu0 0
        %541 = vmatprep.subr.bf16.mxu0 0
        %542 = vmatpush1.bf16.msra.mxu0 0
        %543 = vmatprep.subr.bf16.mxu0 0
        %544 = vmatpush1.bf16.msra.mxu0 0
        %545 = vmatprep.subr.bf16.mxu0 0
        %546 = vmatpush1.bf16.msra.mxu0 0
        %547 = vmatprep.subr.bf16.mxu0 0
        %548 = vmatpush1.bf16.msra.mxu0 0
        %549 = vmatprep.subr.bf16.mxu0 0
        %550 = vmatpush1.bf16.msra.mxu0 0
        %551 = vmatprep.subr.bf16.mxu0 0
        %552 = vmatpush1.bf16.msra.mxu0 0
        %553 = vmatprep.subr.bf16.mxu0 0
        %554 = vmatpush1.bf16.msra.mxu0 0
        %555 = vmatprep.mubr.bf16.mxu0 0
        %556 = vmatmul.mubr.bf16.gmra.mrb[0].mxu0 %v519
        %v557 = vpop.f32.mrb[0].mxu0
        %v558 = vadd.f32 %v497, %v557
        %v559 = vpop.f32.mrb[0].mxu0
        %v560 = vpop.f32.mrb[0].mxu0
        %v561 = vadd.f32 %v500, %v560
        %v562 = vpop.f32.mrb[0].mxu0
        %563 = vmatprep.mubr.bf16.mxu0 0
        %564 = vmatmul.mubr.bf16.gmra.mrb[0].mxu0 %v520
        %v565 = vpop.f32.mrb[0].mxu0
        %v566 = vadd.f32 %v505, %v565
        %v567 = vpop.f32.mrb[0].mxu0
        %v568 = vpop.f32.mrb[0].mxu0
        %v569 = vadd.f32 %v508, %v568
        %v570 = vpop.f32.mrb[0].mxu0
        %571 = vdwg.mxu0
        %572 = vst [vmem:[%s179] sm:$0xff] %v558
        %573 = vst [vmem:[%s179 + $0x8] sm:$0xff] %v561
        %574 = vst [vmem:[%s179 + $0x10] sm:$0xff] %v566
        %575 = vst [vmem:[%s179 + $0x18] sm:$0xff] %v569
        %s576 = sand.u32 %s106, 1
        %s577 = sand.u32 %s106, 1
        %s578 = smul.addr %s577, 32
        %s579 = scalar_lea.vmem [#allocation2], %s578
        // Predicated region
        $region33: #{tmae_temporal_embedding.1} parent=31 // pred_check
          %p580 = pneg %p116
        $region34: #{tmae_temporal_embedding.1} parent=31 // pred_check_branch
          %582 = sbr.rel (%p580) target = $region36
        $region35: #{tmae_temporal_embedding.1} parent=31 // pred_region
          %s583 = smul.addr %s18, 8
          %s584 = sadd.s32 %s19, %s583
          %s585 = smul.addr %s584, 8
          %s586 = scalar_lea.vmem %s3, %s585
          // Predicated region
          $region37: #{tmae_temporal_embedding.1} parent=35 // pred_check
            _
          $region38: #{tmae_temporal_embedding.1} parent=35 // pred_check_branch
            %588 = sbr.rel (0) target = $region40
          $region39: #{tmae_temporal_embedding.1} parent=35 // pred_region
            // Predicated region
            $region41: #{tmae_temporal_embedding.1} parent=39 // pred_check
              _
            $region42: #{tmae_temporal_embedding.1} parent=39 // pred_check_branch
              %590 = sbr.rel (0) target = $region44
            $region43: #{tmae_temporal_embedding.1} parent=39 // pred_region
              // Predicated region
              $region56: #{tmae_temporal_embedding.1} parent=43 // pred_check
                _
              $region57: #{tmae_temporal_embedding.1} parent=43 // pred_check_branch
                %611 = sbr.rel (0) target = $region59
              $region58: #{tmae_temporal_embedding.1} parent=43 // pred_region
                loop: start=0, step=1, limit=1
                $region60: #{tmae_temporal_embedding.1} parent=58 // loop_pre_header
                  _
                $region61: #{tmae_temporal_embedding.1} parent=58 // loop_header
                  %s613 = sphi 0, %s617
                  %p614 = scmp.ge.s32.totalorder %s613, 1
                  %s618 = sphi %s579, %s579
                  %s619 = sphi %s586, %s586
                $region62: #{tmae_temporal_embedding.1} parent=58 // loop_header_branch
                  %616 = sbr.rel (%p614) target = $region66
                $region63: #{tmae_temporal_embedding.1} parent=58 // loop_body
                  %v620 = vld [vmem:[%s618] sm:$0xff]
                  %621 = vst [vmem:[%s619] sm:$0xff] %v620
                  %v622 = vld [vmem:[%s618 + $0x8] sm:$0xff]
                  %623 = vst [vmem:[%s619 + $0x10] sm:$0xff] %v622
                  %v624 = vld [vmem:[%s618 + $0x10] sm:$0xff]
                  %625 = vst [vmem:[%s619 + $0x20] sm:$0xff] %v624
                  %v626 = vld [vmem:[%s618 + $0x18] sm:$0xff]
                  %627 = vst [vmem:[%s619 + $0x30] sm:$0xff] %v626
                $region64: #{tmae_temporal_embedding.1} parent=58 // loop_footer
                  %s617 = sadd.s32 1, %s613
                $region65: #{tmae_temporal_embedding.1} parent=58 // loop_footer_branch
                  %612 = sbr.rel target = $region61
                $region66: #{tmae_temporal_embedding.1} parent=58 // loop_exit
                  _
              $region59: #{tmae_temporal_embedding.1} parent=43 // pred_fallthru
                _
              // Predicated region
              $region67: #{tmae_temporal_embedding.1} parent=43 // pred_check
                _
              $region68: #{tmae_temporal_embedding.1} parent=43 // pred_check_branch
                %629 = sbr.rel target = $region70
              $region69: #{tmae_temporal_embedding.1} parent=43 // pred_region
                _
              $region70: #{tmae_temporal_embedding.1} parent=43 // pred_fallthru
                _
            $region44: #{tmae_temporal_embedding.1} parent=39 // pred_fallthru
              _
            // Predicated region
            $region45: #{tmae_temporal_embedding.1} parent=39 // pred_check
              _
            $region46: #{tmae_temporal_embedding.1} parent=39 // pred_check_branch
              %592 = sbr.rel target = $region48
            $region47: #{tmae_temporal_embedding.1} parent=39 // pred_region
              loop: start=0, step=1, limit=1
              $region49: #{tmae_temporal_embedding.1} parent=47 // loop_pre_header
                _
              $region50: #{tmae_temporal_embedding.1} parent=47 // loop_header
                %s595 = sphi 0, %s599
                %p596 = scmp.ge.s32.totalorder %s595, 1
                %s600 = sphi %s579, %s579
                %s601 = sphi %s586, %s586
              $region51: #{tmae_temporal_embedding.1} parent=47 // loop_header_branch
                %598 = sbr.rel (%p596) target = $region55
              $region52: #{tmae_temporal_embedding.1} parent=47 // loop_body
                %v602 = vld [vmem:[%s600] sm:$0xff]
                %603 = vst [vmem:[%s601] sm:$0xff] %v602
                %v604 = vld [vmem:[%s600 + $0x8] sm:$0xff]
                %605 = vst [vmem:[%s601 + $0x10] sm:$0xff] %v604
                %v606 = vld [vmem:[%s600 + $0x10] sm:$0xff]
                %607 = vst [vmem:[%s601 + $0x20] sm:$0xff] %v606
                %v608 = vld [vmem:[%s600 + $0x18] sm:$0xff]
                %609 = vst [vmem:[%s601 + $0x30] sm:$0xff] %v608
              $region53: #{tmae_temporal_embedding.1} parent=47 // loop_footer
                %s599 = sadd.s32 1, %s595
              $region54: #{tmae_temporal_embedding.1} parent=47 // loop_footer_branch
                %594 = sbr.rel target = $region50
              $region55: #{tmae_temporal_embedding.1} parent=47 // loop_exit
                _
            $region48: #{tmae_temporal_embedding.1} parent=39 // pred_fallthru
              _
          $region40: #{tmae_temporal_embedding.1} parent=35 // pred_fallthru
            _
          %630 = vnop
        $region36: #{tmae_temporal_embedding.1} parent=31 // pred_fallthru
          _
      $region32: #{tmae_temporal_embedding.1} parent=5 // pred_fallthru
        _
      %p631 = scmp.le.s32.totalorder 2, %s9
      // Predicated region
      $region71: #{tmae_temporal_embedding.1} parent=5 // pred_check
        %p632 = pneg %p631
      $region72: #{tmae_temporal_embedding.1} parent=5 // pred_check_branch
        %634 = sbr.rel (%p632) target = $region74
      $region73: #{tmae_temporal_embedding.1} parent=5 // pred_region
        %s635 = ssub.s32 %s9, 2
        // Predicated region
        $region75: #{tmae_temporal_embedding.1} parent=73 // pred_check
          %p636 = pneg %p122
        $region76: #{tmae_temporal_embedding.1} parent=73 // pred_check_branch
          %638 = sbr.rel (%p636) target = $region78
        $region77: #{tmae_temporal_embedding.1} parent=73 // pred_region
          %s639 = sand.u32 %s107, 1
          %s640 = sand.u32 %s107, 1
          %s641 = smul.addr %s640, 32
          %s642 = scalar_lea.vmem [#allocation2], %s641
        $region78: #{tmae_temporal_embedding.1} parent=73 // pred_fallthru
          _
      $region74: #{tmae_temporal_embedding.1} parent=5 // pred_fallthru
        _
    $region6: #{tmae_temporal_embedding.1} parent=1 // loop_footer
      %s13 = sadd.s32 1, %s9
    $region7: #{tmae_temporal_embedding.1} parent=1 // loop_footer_branch
      %8 = sbr.rel target = $region3
    $region8: #{tmae_temporal_embedding.1} parent=1 // loop_exit
      _

</llo_original>
